<compile_context>
chip_gen: v5e
topology: v5e:2x2
jax: 0.10.0
libtpu: 0.0.40
codegen_flags: <defaults>
</compile_context>

<pallas_src>
import functools
import math

import jax
import jax.numpy as jnp
from jax.experimental import pallas as pl
from jax.experimental.pallas import tpu as pltpu


def _arcface_kernel(logits_ref, labels_ref, out_ref, *,
                    s, cos_m, sin_m, theta, sinmm, easy_margin, clamp_input):
    j = pl.program_id(1)
    tb, tc = logits_ref.shape

    x = logits_ref[...].astype(jnp.float32)            # (tb, tc)
    labels = labels_ref[...]                            # (tb, 1) int32

    # Column index within this tile; fold the tile offset into the (scalar)
    # label rather than adding j*tc to the vector iota.  A label of -1 (or any
    # out-of-range label) yields a relative index outside [0, tc) and never
    # matches, so no extra `label != -1` mask is needed.  Likewise a valid
    # label (< C) can never land on a padded edge column.
    col = jax.lax.broadcasted_iota(jnp.int32, (tb, tc), 1)
    rel = labels - j * tc
    is_target = col == rel                               # (tb, tc) bool

    # ArcFace margin math over the whole tile (VPU/EUP have slack in the
    # mem-bound regime), selected only at the target column.  Kept in f32 for
    # accuracy of the sqrt / cos(theta+m) chain.
    one_minus = 1.0 - x * x
    if clamp_input:
        # Avoid NaN if logits drift slightly outside [-1, 1].
        one_minus = jnp.maximum(one_minus, 0.0)
    sin_theta = jnp.sqrt(one_minus)
    cos_theta_m = x * cos_m - sin_theta * sin_m
    if easy_margin:
        margined = jnp.where(x > 0.0, cos_theta_m, x)
    else:
        margined = jnp.where(x > theta, cos_theta_m, x - sinmm)

    out_ref[...] = (jnp.where(is_target, margined, x) * s).astype(out_ref.dtype)


def _round_up(x, m):
    return (x + m - 1) // m * m


def _vmem_capacity_bytes():
    """Best-effort query of per-core VMEM; conservative (v7x) fallback."""
    try:
        info = pltpu.get_tpu_info()
        cap = getattr(info, "vmem_capacity_bytes", None)
        if cap:
            return int(cap)
    except Exception:
        pass
    return 64 << 20


def _pick_tiles(B, C, dtype, *, block_budget_bytes, min_row_blocks=8):
    """Pick (tb, tc): lane-dense tc, VMEM-budgeted block, >=min_row_blocks steps
    for large arrays.  Tiles need not divide (B, C) — the grid uses pl.cdiv and
    edge blocks are padded (legal since tb % sublane == 0 / tc % 128 == 0)."""
    itemsize = jnp.dtype(dtype).itemsize
    sublane = max(8, 32 // itemsize)          # f32: 8, bf16: 16, int8/fp8: 32
    budget_elems = max(block_budget_bytes // itemsize, sublane * 128)

    # Lane (class) axis: as wide as possible for unmasked stores.  tc == C is
    # always legal (full dim); otherwise a multiple of 128 with a padded edge.
    lane_cap = max(128, (budget_elems // sublane) // 128 * 128)
    tc = C if C <= lane_cap else lane_cap

    # Row (sublane) axis: fill the block budget...
    tb = max(sublane, (budget_elems // tc) // sublane * sublane)

    # ...but once the array is more than a few MiB, keep >= min_row_blocks grid
    # steps so the DMA<->compute pipeline overlaps and v7x's two TensorCores
    # both get work.
    if B * C * itemsize > (4 << 20):
        row_cap = max(sublane, (B // min_row_blocks) // sublane * sublane)
        tb = min(tb, row_cap)

    if tb >= B:
        tb = B                                 # full-dim block (always legal)
    return tb, tc


def arcface(logits, labels, *, s=64.0, margin=0.5, easy_margin=False,
            assume_cosine=False, tb=None, tc=None):
    """ArcFace margin + scale.

    logits: (B, C) cosine similarities; labels: (B,) int32, -1 = skip row.
    assume_cosine=True drops the 1-x^2>=0 clamp (inputs guaranteed in [-1,1]).
    """
    B, C = logits.shape
    itemsize = jnp.dtype(logits.dtype).itemsize
    vmem_cap = _vmem_capacity_bytes()
    # ~8 MiB blocks on 128 MiB-VMEM chips (v5e/v6e), ~4 MiB on v7x (64 MiB).
    block_budget = min(max(vmem_cap // 16, 2 << 20), 8 << 20)

    dtb, dtc = _pick_tiles(B, C, logits.dtype, block_budget_bytes=block_budget)
    tb = dtb if tb is None else int(tb)
    tc = dtc if tc is None else int(tc)
    if not (tb == B or tb % 8 == 0):
        raise ValueError(f"tb={tb} must equal B or be a multiple of 8")
    if not (tc == C or tc % 128 == 0):
        raise ValueError(f"tc={tc} must equal C or be a multiple of 128")

    labels2d = labels.reshape(B, 1).astype(jnp.int32)
    grid = (pl.cdiv(B, tb), pl.cdiv(C, tc))

    # Derive the VMEM limit from the actual (double-buffered, lane/sublane
    # padded) block bytes + slack, instead of a blanket constant.
    blk_bytes = _round_up(tb, 8) * _round_up(tc, 128) * itemsize
    lbl_bytes = _round_up(tb, 8) * 128 * 4
    vmem_limit = 2 * (2 * blk_bytes + lbl_bytes) + (2 << 20)
    vmem_limit = max(vmem_limit, 16 << 20)
    vmem_limit = min(vmem_limit, (vmem_cap * 3) // 4)

    kernel = functools.partial(
        _arcface_kernel,
        s=float(s),
        cos_m=float(math.cos(margin)),
        sin_m=float(math.sin(margin)),
        theta=float(math.cos(math.pi - margin)),
        sinmm=float(math.sin(math.pi - margin) * margin),
        easy_margin=bool(easy_margin),
        clamp_input=not assume_cosine,
    )

    return pl.pallas_call(
        kernel,
        out_shape=jax.ShapeDtypeStruct((B, C), logits.dtype),
        grid_spec=pltpu.PrefetchScalarGridSpec(
            num_scalar_prefetch=0,
            grid=grid,
            in_specs=[
                pl.BlockSpec((tb, tc), lambda i, j: (i, j)),
                pl.BlockSpec((tb, 1), lambda i, j: (i, 0)),
            ],
            out_specs=pl.BlockSpec((tb, tc), lambda i, j: (i, j)),
        ),
        # Update the logits buffer in place (no extra B*C HBM allocation).
        input_output_aliases={0: 0},
        compiler_params=pltpu.CompilerParams(
            dimension_semantics=("parallel", "parallel"),
            vmem_limit_bytes=int(vmem_limit),
        ),
    )(logits, labels2d)


def arcface_ref(logits, labels, *, s=64.0, margin=0.5, easy_margin=False):
    """Pure-JAX reference matching the PyTorch ArcFace forward."""
    cos_m, sin_m = math.cos(margin), math.sin(margin)
    theta = math.cos(math.pi - margin)
    sinmm = math.sin(math.pi - margin) * margin
    B, C = logits.shape
    lab = labels.reshape(B, 1)
    one_hot = (jax.lax.broadcasted_iota(jnp.int32, (B, C), 1) == lab) & (lab >= 0)
    x = logits.astype(jnp.float32)
    sin_theta = jnp.sqrt(jnp.maximum(1.0 - x * x, 0.0))
    cos_theta_m = x * cos_m - sin_theta * sin_m
    if easy_margin:
        margined = jnp.where(x > 0.0, cos_theta_m, x)
    else:
        margined = jnp.where(x > theta, cos_theta_m, x - sinmm)
    return (jnp.where(one_hot, margined, x) * s).astype(logits.dtype)


if __name__ == "__main__":
    key = jax.random.PRNGKey(0)
    k1, k2, k3, k4, k5 = jax.random.split(key, 5)

    # --- Case 1: small aligned f32, default tile selection (single block). ---
    B, C = 8, 512
    logits = jax.random.uniform(k1, (B, C), jnp.float32, -0.99, 0.99)
    labels = jax.random.randint(k2, (B,), 0, C, dtype=jnp.int32)
    drop = jax.random.bernoulli(k3, 0.25, (B,))           # some rows ignored (-1)
    labels = jnp.where(drop, -1, labels)

    ref = arcface_ref(logits, labels, s=64.0, margin=0.5)
    out = jax.block_until_ready(arcface(logits, labels, s=64.0, margin=0.5))
    assert out.dtype == logits.dtype
    assert jnp.allclose(out, ref, atol=1e-4, rtol=1e-5), "f32 mismatch vs reference"

    # --- Case 2: bf16, non-dividing tiles -> padded edge blocks via cdiv grid.
    B2, C2 = 24, 640
    logits2 = jax.random.uniform(k4, (B2, C2), jnp.float32,
                                 -0.99, 0.99).astype(jnp.bfloat16)
    labels2 = jax.random.randint(k5, (B2,), 0, C2, dtype=jnp.int32)

    ref2 = arcface_ref(logits2, labels2, s=64.0, margin=0.5)
    out2 = jax.block_until_ready(
        arcface(logits2, labels2, s=64.0, margin=0.5, tb=16, tc=512))
    assert out2.dtype == logits2.dtype
    assert jnp.allclose(out2.astype(jnp.float32), ref2.astype(jnp.float32),
                        atol=5e-2, rtol=5e-2), "bf16 mismatch vs reference"

    print("KERNEL_OK")
</pallas_src>

<mosaic_0001>
module attributes {stable_mosaic.version = 11 : i64} {
  func.func @_arcface_kernel(%arg0: i32, %arg1: i32, %arg2: memref<8x512xf32, #tpu.memory_space<vmem>>, %arg3: memref<8x1xi32, #tpu.memory_space<vmem>>, %arg4: memref<8x512xf32, #tpu.memory_space<vmem>>) attributes {dimension_semantics = [#tpu.dimension_semantics<parallel>, #tpu.dimension_semantics<parallel>], iteration_bounds = array<i64: 1, 1>, scalar_prefetch = 0 : i64, scratch_operands = 0 : i64, tpu.core_type = #tpu.core_type<tc>, window_params = [{transform_indices = @transform_0, window_bounds = array<i64: 8, 512>}, {transform_indices = @transform_1, window_bounds = array<i64: 8, 1>}, {transform_indices = @transform_2, window_bounds = array<i64: 8, 512>}]} {
    %c0 = arith.constant 0 : index
    %c0_0 = arith.constant 0 : index
    %0 = vector.load %arg2[%c0, %c0_0] : memref<8x512xf32, #tpu.memory_space<vmem>>, vector<8x512xf32>
    %c0_1 = arith.constant 0 : index
    %c0_2 = arith.constant 0 : index
    %1 = vector.load %arg3[%c0_1, %c0_2] : memref<8x1xi32, #tpu.memory_space<vmem>>, vector<8x1xi32>
    %2 = tpu.iota {dimensions = array<i32: 1>} : vector<8x512xi32>
    %c512_i32 = arith.constant 512 : i32
    %3 = arith.muli %arg1, %c512_i32 : i32
    %4 = vector.broadcast %3 : i32 to vector<8x1xi32>
    %5 = arith.subi %1, %4 : vector<8x1xi32>
    %6 = vector.broadcast %5 : vector<8x1xi32> to vector<8x512xi32>
    %7 = arith.cmpi eq, %2, %6 : vector<8x512xi32>
    %8 = arith.mulf %0, %0 : vector<8x512xf32>
    %cst = arith.constant 1.000000e+00 : f32
    %9 = vector.broadcast %cst : f32 to vector<8x512xf32>
    %10 = arith.subf %9, %8 : vector<8x512xf32>
    %cst_3 = arith.constant 0.000000e+00 : f32
    %11 = vector.broadcast %cst_3 : f32 to vector<8x512xf32>
    %12 = arith.maximumf %10, %11 : vector<8x512xf32>
    %13 = math.sqrt %12 : vector<8x512xf32>
    %cst_4 = arith.constant 0.87758255 : f32
    %14 = vector.broadcast %cst_4 : f32 to vector<8x512xf32>
    %15 = arith.mulf %0, %14 : vector<8x512xf32>
    %cst_5 = arith.constant 0.47942555 : f32
    %16 = vector.broadcast %cst_5 : f32 to vector<8x512xf32>
    %17 = arith.mulf %13, %16 : vector<8x512xf32>
    %18 = arith.subf %15, %17 : vector<8x512xf32>
    %cst_6 = arith.constant -0.87758255 : f32
    %19 = vector.broadcast %cst_6 : f32 to vector<8x512xf32>
    %20 = arith.cmpf ogt, %0, %19 : vector<8x512xf32>
    %cst_7 = arith.constant 0.239712775 : f32
    %21 = vector.broadcast %cst_7 : f32 to vector<8x512xf32>
    %22 = arith.subf %0, %21 : vector<8x512xf32>
    %23 = arith.select %20, %18, %22 : vector<8x512xi1>, vector<8x512xf32>
    %24 = arith.select %7, %23, %0 : vector<8x512xi1>, vector<8x512xf32>
    %cst_8 = arith.constant 6.400000e+01 : f32
    %25 = vector.broadcast %cst_8 : f32 to vector<8x512xf32>
    %26 = arith.mulf %24, %25 : vector<8x512xf32>
    %c0_9 = arith.constant 0 : index
    %c0_10 = arith.constant 0 : index
    %27 = vector.load %arg4[%c0_9, %c0_10] : memref<8x512xf32, #tpu.memory_space<vmem>>, vector<8x512xf32>
    tpu.vector_store %arg4[%c0_9, %c0_10], %26 {strides = array<i32>} : memref<8x512xf32, #tpu.memory_space<vmem>>, vector<8x512xf32>,
    return
  }
  func.func @transform_0(%arg0: i32, %arg1: i32) -> (i32, i32) {
    %c0_i32 = arith.constant 0 : i32
    return %arg0, %arg1 : i32, i32
  }
  func.func @transform_1(%arg0: i32, %arg1: i32) -> (i32, i32) {
    %c0_i32 = arith.constant 0 : i32
    %c0_i32_0 = arith.constant 0 : i32
    return %arg0, %c0_i32 : i32, i32
  }
  func.func @transform_2(%arg0: i32, %arg1: i32) -> (i32, i32) {
    %c0_i32 = arith.constant 0 : i32
    return %arg0, %arg1 : i32, i32
  }
}

</mosaic_0001>

<llo_original>
// kernel: tpu_custom_call.1
$region0: #{tpu_custom_call.1}
  #allocation0 [shape = 'u32[]', space=smem, size = 0x4, offset = 0x4, fixed_abs, tag = 'smem constant byte address 0x4 - core index']
  #allocation1 [shape = 'u32[72,128]{1,0:T(1,128)}', space=vmem, size = 0x9000, scoped, tag = 'internal scratch']
  %s0 = inlined_call_operand.hbm [shape: f32[8,512], index: 0, kind: input, shape index: {}, may-alias: {0,2}]
  %s1 = inlined_call_operand.vmem [shape: s32[8,1], index: 1, kind: input, shape index: {}]
  %s2 = inlined_call_operand.hbm [shape: f32[8,512], index: 2, kind: output, shape index: {}, may-alias: {0,2}]
  %s3 = sld [smem:[#allocation0]]
  $region22: #{tpu_custom_call.1} parent=0
    _
  %s5 = ssub.s32 1, %s3
  %s6 = scalar_select 0, %s5, %s3
  $region1: #{tpu_custom_call.1} parent=0
    #allocation2 [shape = 'u8[16384]{0}', space=vmem, size = 0x4000, scoped, tag = 'input window, operand 0, single buffered']
    #allocation3 [shape = 's32[1]{0}', space=sflag, size = 0x4, scoped, tag = 'scoped memory for tpu_custom_call.1']
    #allocation4 [shape = 's32[1]{0}', space=sflag, size = 0x4, scoped, tag = 'scoped memory for tpu_custom_call.1']
    #allocation5 [shape = 'u8[16384]{0}', space=vmem, size = 0x4000, scoped, tag = 'output window, operand 0, single buffered']
    %7 = vsyncpa [#allocation3], 0
    %8 = vsyncpa [#allocation4], 0
    // Predicated region
    $region2: #{tpu_custom_call.1} parent=1 // pred_check
      _
    $region3: #{tpu_custom_call.1} parent=1 // pred_check_branch
      %10 = sbr.rel (0) target = $region5
    $region4: #{tpu_custom_call.1} parent=1 // pred_region
      %12 = vsyncadd [#allocation3], 0
      %s14 = sshll.u32 %s0, 4
      %s15 = int_to_ptr.hbm [resolvable:$true] %s14
      %s16 = sshll.u32 [#allocation2], 4
      %s17 = int_to_ptr.vmem [resolvable:$true] %s16
      %19 = dma.hbm_to_vmem [thread:$0]  %s15, 512, %s17, [#allocation3]
    $region5: #{tpu_custom_call.1} parent=1 // pred_fallthru
      _
    // Predicated region
    $region6: #{tpu_custom_call.1} parent=1 // pred_check
      _
    $region7: #{tpu_custom_call.1} parent=1 // pred_check_branch
      %21 = sbr.rel (0) target = $region9
    $region8: #{tpu_custom_call.1} parent=1 // pred_region
      _
    $region9: #{tpu_custom_call.1} parent=1 // pred_fallthru
      _
    // Predicated region
    $region10: #{tpu_custom_call.1} parent=1 // pred_check
      _
    $region11: #{tpu_custom_call.1} parent=1 // pred_check_branch
      %23 = sbr.rel (0) target = $region13
    $region12: #{tpu_custom_call.1} parent=1 // pred_region
      %25 = dma.done [#allocation3], 512
    $region13: #{tpu_custom_call.1} parent=1 // pred_fallthru
      _
    %v26 = vld [vmem:[#allocation2] sm:$0xff]
    %v27 = vld [vmem:[#allocation2 + $0x8] sm:$0xff]
    %v28 = vld [vmem:[#allocation2 + $0x10] sm:$0xff]
    %v29 = vld [vmem:[#allocation2 + $0x18] sm:$0xff]
    %v30 = vld [vmem:[%s1] sm:$0xff]
    %v31 = vlaneseq
    %v32 = vand.u32 %v31, 127
    %v33 = vadd.s32 %v32, 128
    %v34 = vadd.s32 %v32, 256
    %v35 = vadd.s32 %v32, 384
    %s36 = smul.u32 0, 512
    %v37 = vstv %s36
    %v38 = vsub.s32 %v30, %v37
    %39 = vset.pattern.permute.xlu0 0
    %40 = vperm.xlu0 %39, %v38
    %v41 = vpop.permute.xlu0 %40
    %vm42 = vcmp.eq.s32.totalorder %v32, %v41
    %vm43 = vcmp.eq.s32.totalorder %v33, %v41
    %vm44 = vcmp.eq.s32.totalorder %v34, %v41
    %vm45 = vcmp.eq.s32.totalorder %v35, %v41
    %v46 = vmul.f32 %v26, %v26
    %v47 = vmul.f32 %v27, %v27
    %v48 = vmul.f32 %v28, %v28
    %v49 = vmul.f32 %v29, %v29
    %v50 = vsub.f32 1.0, %v46
    %v51 = vsub.f32 1.0, %v47
    %v52 = vsub.f32 1.0, %v48
    %v53 = vsub.f32 1.0, %v49
    %v54 = vmax.f32 %v50, 0.0
    %v55 = vmax.f32 %v51, 0.0
    %v56 = vmax.f32 %v52, 0.0
    %v57 = vmax.f32 %v53, 0.0
    %v58 = vrsqrt.pop %v54
    %v59 = vmul.f32 %v58, %v54
    %v60 = vmul.f32 %v59, %v58
    %v61 = vmul.f32 0.5, %v60
    %v62 = vsub.f32 1.5, %v61
    %v63 = vmul.f32 %v58, %v62
    %v64 = vmul.f32 %v54, %v63
    %vm65 = vcmp.eq.f32.partialorder %v54, inf
    %v66 = vsel %vm65, %v54, %v64
    %vm67 = vcmp.eq.f32.partialorder %v54, 0.0
    %v68 = vand.u32 %v54, 2147483648
    %v69 = vsel %vm67, %v68, %v66
    %v70 = vrsqrt.pop %v55
    %v71 = vmul.f32 %v70, %v55
    %v72 = vmul.f32 %v71, %v70
    %v73 = vmul.f32 0.5, %v72
    %v74 = vsub.f32 1.5, %v73
    %v75 = vmul.f32 %v70, %v74
    %v76 = vmul.f32 %v55, %v75
    %vm77 = vcmp.eq.f32.partialorder %v55, inf
    %v78 = vsel %vm77, %v55, %v76
    %vm79 = vcmp.eq.f32.partialorder %v55, 0.0
    %v80 = vand.u32 %v55, 2147483648
    %v81 = vsel %vm79, %v80, %v78
    %v82 = vrsqrt.pop %v56
    %v83 = vmul.f32 %v82, %v56
    %v84 = vmul.f32 %v83, %v82
    %v85 = vmul.f32 0.5, %v84
    %v86 = vsub.f32 1.5, %v85
    %v87 = vmul.f32 %v82, %v86
    %v88 = vmul.f32 %v56, %v87
    %vm89 = vcmp.eq.f32.partialorder %v56, inf
    %v90 = vsel %vm89, %v56, %v88
    %vm91 = vcmp.eq.f32.partialorder %v56, 0.0
    %v92 = vand.u32 %v56, 2147483648
    %v93 = vsel %vm91, %v92, %v90
    %v94 = vrsqrt.pop %v57
    %v95 = vmul.f32 %v94, %v57
    %v96 = vmul.f32 %v95, %v94
    %v97 = vmul.f32 0.5, %v96
    %v98 = vsub.f32 1.5, %v97
    %v99 = vmul.f32 %v94, %v98
    %v100 = vmul.f32 %v57, %v99
    %vm101 = vcmp.eq.f32.partialorder %v57, inf
    %v102 = vsel %vm101, %v57, %v100
    %vm103 = vcmp.eq.f32.partialorder %v57, 0.0
    %v104 = vand.u32 %v57, 2147483648
    %v105 = vsel %vm103, %v104, %v102
    %v106 = vmul.f32 %v26, 0.87758255
    %v107 = vmul.f32 %v27, 0.87758255
    %v108 = vmul.f32 %v28, 0.87758255
    %v109 = vmul.f32 %v29, 0.87758255
    %v110 = vmul.f32 %v69, 0.47942555
    %v111 = vmul.f32 %v81, 0.47942555
    %v112 = vmul.f32 %v93, 0.47942555
    %v113 = vmul.f32 %v105, 0.47942555
    %v114 = vsub.f32 %v106, %v110
    %v115 = vsub.f32 %v107, %v111
    %v116 = vsub.f32 %v108, %v112
    %v117 = vsub.f32 %v109, %v113
    %vm118 = vcmp.gt.f32.partialorder %v26, -0.87758255
    %vm119 = vcmp.gt.f32.partialorder %v27, -0.87758255
    %vm120 = vcmp.gt.f32.partialorder %v28, -0.87758255
    %vm121 = vcmp.gt.f32.partialorder %v29, -0.87758255
    %v122 = vsub.f32 %v26, 0.23971277
    %v123 = vsub.f32 %v27, 0.23971277
    %v124 = vsub.f32 %v28, 0.23971277
    %v125 = vsub.f32 %v29, 0.23971277
    %v126 = vsel %vm118, %v114, %v122
    %v127 = vsel %vm119, %v115, %v123
    %v128 = vsel %vm120, %v116, %v124
    %v129 = vsel %vm121, %v117, %v125
    %v130 = vsel %vm42, %v126, %v26
    %v131 = vsel %vm43, %v127, %v27
    %v132 = vsel %vm44, %v128, %v28
    %v133 = vsel %vm45, %v129, %v29
    %v134 = vmul.f32 %v130, 64.0
    %v135 = vmul.f32 %v131, 64.0
    %v136 = vmul.f32 %v132, 64.0
    %v137 = vmul.f32 %v133, 64.0
    %138 = vst [vmem:[#allocation5] sm:$0xff] %v134
    %139 = vst [vmem:[#allocation5 + $0x8] sm:$0xff] %v135
    %140 = vst [vmem:[#allocation5 + $0x10] sm:$0xff] %v136
    %141 = vst [vmem:[#allocation5 + $0x18] sm:$0xff] %v137
    // Predicated region
    $region14: #{tpu_custom_call.1} parent=1 // pred_check
      _
    $region15: #{tpu_custom_call.1} parent=1 // pred_check_branch
      %143 = sbr.rel (0) target = $region17
    $region16: #{tpu_custom_call.1} parent=1 // pred_region
      %145 = vsyncadd [#allocation4], 0
      %s147 = sshll.u32 [#allocation5], 4
      %s148 = int_to_ptr.vmem [resolvable:$true] %s147
      %s149 = sshll.u32 %s2, 4
      %s150 = int_to_ptr.hbm [resolvable:$true] %s149
      %152 = dma.vmem_to_hbm [thread:$0]  %s148, 512, %s150, [#allocation4]
    $region17: #{tpu_custom_call.1} parent=1 // pred_fallthru
      _
    // Predicated region
    $region18: #{tpu_custom_call.1} parent=1 // pred_check
      _
    $region19: #{tpu_custom_call.1} parent=1 // pred_check_branch
      %154 = sbr.rel (0) target = $region21
    $region20: #{tpu_custom_call.1} parent=1 // pred_region
      %156 = dma.done [#allocation4], 512
    $region21: #{tpu_custom_call.1} parent=1 // pred_fallthru
      _
    %157 = vsyncpa [#allocation3], 1
    %158 = vsyncpa [#allocation4], 1

</llo_original>
